<compile_context>
chip_gen: v7x
topology: tpu7x:2x2x1
jax: 0.10.0
libtpu: 0.0.40
codegen_flags: <defaults>
</compile_context>

<pallas_src>
import math
import functools
import numpy as np
import jax
import jax.numpy as jnp
from jax.experimental import pallas as pl
from jax.experimental.pallas import tpu as pltpu

# ---- small, self-consistent shapes ------------------------------------------
TOPIC_NUM = 8          # divisible by topic_batch_size
TOPIC_BATCH = 2        # fixed by the module (topic_batch_size = 2)
TOPIC_EMB_DIM = 64
FEAT_DIM = 128         # per-frame feature dim
CONCEPT_DIM = 32
SHRINK_RATIO = 16      # self.shrink_ratio
THRESHOLD = 0.0        # self.threshold == 0 (activate_non_linearity not called)
LANE = 128


# ---- Pallas kernel: all topics scored in a single step -----------------------
def _topic_score_kernel(tp_ref, emb_ref, w_ref, frames_t_ref,
                        overall_ref, all_scores_ref,
                        *, topic_num, topic_batch, threshold, inv_sqrt_d):
    # score_net surrogate (inner_product similarity): project topic embeddings,
    # score against every frame, squash with sigmoid. Both contractions are
    # plain 2-D MXU matmuls (contraction dim on sublanes/lanes, bf16 in,
    # f32 accumulation).
    q = jnp.dot(emb_ref[...], w_ref[...],
                preferred_element_type=jnp.float32)                     # (T, D) f32
    s = jnp.dot(q.astype(frames_t_ref.dtype), frames_t_ref[...],
                preferred_element_type=jnp.float32) * inv_sqrt_d        # (T, F_pad)
    topic_score = jax.nn.sigmoid(s)
    all_scores_ref[...] = topic_score                                   # one lane-dense store

    # Per-topic-batch mixing -> threshold -> ReLU -> accumulate, exactly
    # matching the ordering of the PyTorch loop (ReLU applied per topic batch
    # BEFORE summation). topic_probs are scalars in SMEM, so the mixing is
    # scalar*vector broadcasts on the VPU (no degenerate tiny matmuls).
    n_tb = topic_num // topic_batch
    acc = jnp.zeros(overall_ref.shape, jnp.float32)
    for g in range(n_tb):                           # static, fully unrolled
        lo = g * topic_batch
        mixed = tp_ref[0, lo] * topic_score[lo:lo + 1, :]
        for t in range(1, topic_batch):
            mixed = mixed + tp_ref[0, lo + t] * topic_score[lo + t:lo + t + 1, :]
        acc = acc + jnp.maximum(mixed - threshold, 0.0)
    overall_ref[...] = acc * (1.0 / topic_num)                          # one lane-dense store


def topic_score_pallas(topic_probs, topic_embeddings, w_sim, frames):
    """Runs the topic-scoring part of TopicAwareModel.forward on TPU.

    topic_probs:      (1, T)  f32
    topic_embeddings: (T, E)  f32
    w_sim:            (E, D)  f32   score_net projection surrogate
    frames:           (F, D)  f32   the single video's frame features
    returns overall_score (1, F), all_scores (T, F)
    """
    B, T = topic_probs.shape
    assert B == 1, "reference expand(topic_batch_size, ...) implies batch_size == 1"
    F, D = frames.shape
    F_pad = ((F + LANE - 1) // LANE) * LANE

    # bf16 MXU inputs; frames pre-transposed to (D, F_pad) so the similarity
    # contraction is MXU-native; F padded to a lane-dense multiple of 128.
    emb_b = topic_embeddings.astype(jnp.bfloat16)
    w_b = w_sim.astype(jnp.bfloat16)
    frames_t = jnp.pad(frames.T.astype(jnp.bfloat16), ((0, 0), (0, F_pad - F)))

    kernel = functools.partial(
        _topic_score_kernel,
        topic_num=T, topic_batch=TOPIC_BATCH,
        threshold=THRESHOLD, inv_sqrt_d=1.0 / math.sqrt(D))

    overall_pad, all_scores_pad = pl.pallas_call(
        kernel,
        out_shape=(jax.ShapeDtypeStruct((B, F_pad), jnp.float32),
                   jax.ShapeDtypeStruct((T, F_pad), jnp.float32)),
        in_specs=[
            pl.BlockSpec(memory_space=pltpu.MemorySpace.SMEM),   # topic_probs (scalars)
            pl.BlockSpec(memory_space=pltpu.MemorySpace.VMEM),   # topic embeddings
            pl.BlockSpec(memory_space=pltpu.MemorySpace.VMEM),   # score projection
            pl.BlockSpec(memory_space=pltpu.MemorySpace.VMEM),   # frames^T (D, F_pad)
        ],
        out_specs=(pl.BlockSpec(memory_space=pltpu.MemorySpace.VMEM),
                   pl.BlockSpec(memory_space=pltpu.MemorySpace.VMEM)),
    )(topic_probs, emb_b, w_b, frames_t)

    return overall_pad[:, :F], all_scores_pad[:, :F]


# ---- plain-JAX glue (matches module semantics) --------------------------------
def get_frame_features(batch, seg_len, shrink_ratio=SHRINK_RATIO):
    """batch: (B, S, M, D); seg_len: static numpy (B, S) with equal row sums.
    Single gather instead of a Python concat loop."""
    B, S, M, D = batch.shape
    idx_rows = [[j * M + k for j in range(S) for k in range(int(seg_len[i, j]))]
                for i in range(B)]
    F = len(idx_rows[0])
    assert all(len(r) == F for r in idx_rows)
    idx = jnp.asarray(np.asarray(idx_rows, dtype=np.int32))              # (B, F)
    frame_features = jnp.take_along_axis(batch.reshape(B, S * M, D),
                                         idx[:, :, None], axis=1)        # (B, F, D)
    target_len = math.ceil(F / shrink_ratio) * shrink_ratio
    pad = jnp.zeros((B, target_len - F, D), dtype=batch.dtype)
    frame_features_pad = jnp.concatenate([frame_features, pad], axis=1)
    return frame_features, frame_features_pad


def make_params(key):
    ks = jax.random.split(key, 4)
    scale = 0.05
    return {
        "topic_embedding": scale * jax.random.normal(ks[0], (TOPIC_NUM, TOPIC_EMB_DIM), jnp.float32),
        "w_topic": scale * jax.random.normal(
            ks[1], (FEAT_DIM + 2 * CONCEPT_DIM, TOPIC_NUM), jnp.float32),
        "b_topic": jnp.zeros((TOPIC_NUM,), jnp.float32),
        "w_sim": scale * jax.random.normal(ks[2], (TOPIC_EMB_DIM, FEAT_DIM), jnp.float32),
    }


def topic_aware_forward(params, batch, seg_len, concept1, concept2):
    B = batch.shape[0]
    # frame_features.expand(topic_batch_size, -1, -1) in the reference requires
    # batch_size == 1: one video's frames broadcast to every topic in a batch.
    assert B == 1
    frame_features, frame_features_pad = get_frame_features(batch, seg_len)
    del frame_features_pad
    # TODO(synk): FeatureEncoder (fast_slow) internals not provided; the surrogate
    # score/topic nets consume raw frame features only, so slow/fast branches are skipped.

    # TODO(synk): transformer TopicNet internals not provided — pooled-linear-softmax surrogate.
    pooled = jnp.concatenate([frame_features.mean(axis=1), concept1, concept2], axis=-1)
    topic_probs = jax.nn.softmax(pooled @ params["w_topic"] + params["b_topic"], axis=-1)  # (B, T)

    # VanillaEmbedding lookup of torch.arange(topic_num) == full table; prior_loss = 0.
    topic_embeddings = params["topic_embedding"]                          # (T, E)
    prior_loss = jnp.float32(0.0)

    overall_score, all_scores = topic_score_pallas(
        topic_probs, topic_embeddings, params["w_sim"], frame_features[0])

    aux = {"topic_probs": topic_probs,
           "all_scores": all_scores[None, ...],                           # unsqueeze(0)
           "prior_loss": prior_loss}
    return overall_score, aux


# ---- pure-JAX reference for numeric verification ------------------------------
def _reference_scores(topic_probs, topic_embeddings, w_sim, frames):
    T = topic_probs.shape[1]
    D = frames.shape[1]
    q = topic_embeddings @ w_sim                                          # (T, D)
    topic_score = jax.nn.sigmoid((q @ frames.T) / math.sqrt(D))           # (T, F)
    overall = jnp.zeros((1, frames.shape[0]), jnp.float32)
    for g in range(T // TOPIC_BATCH):
        lo = g * TOPIC_BATCH
        mixed = topic_probs[:, lo:lo + TOPIC_BATCH] @ topic_score[lo:lo + TOPIC_BATCH]
        overall = overall + jnp.maximum(mixed - THRESHOLD, 0.0)
    return overall / T, topic_score


if __name__ == "__main__":
    key = jax.random.PRNGKey(0)
    k_batch, k_c1, k_c2, k_params = jax.random.split(key, 4)

    B, S, M, D = 1, 4, 8, FEAT_DIM
    batch = jax.random.normal(k_batch, (B, S, M, D), jnp.float32)
    seg_len = np.array([[3, 5, 2, 6]], dtype=np.int32)                    # F = 16
    concept1 = jax.random.normal(k_c1, (B, CONCEPT_DIM), jnp.float32)
    concept2 = jax.random.normal(k_c2, (B, CONCEPT_DIM), jnp.float32)

    params = make_params(k_params)

    overall_score, aux = topic_aware_forward(params, batch, seg_len, concept1, concept2)
    jax.block_until_ready(overall_score)
    jax.block_until_ready(aux["all_scores"])

    F = int(np.sum(seg_len[0]))
    assert overall_score.shape == (B, F)
    assert aux["topic_probs"].shape == (B, TOPIC_NUM)
    assert aux["all_scores"].shape == (1, TOPIC_NUM, F)
    assert bool(jnp.all(jnp.isfinite(overall_score)))

    # numeric check against pure-JAX reference (loose tol: bf16 MXU inputs)
    frame_features, _ = get_frame_features(batch, seg_len)
    ref_overall, ref_scores = _reference_scores(
        aux["topic_probs"], params["topic_embedding"], params["w_sim"], frame_features[0])
    np.testing.assert_allclose(np.asarray(overall_score), np.asarray(ref_overall),
                               rtol=2e-2, atol=2e-2)
    np.testing.assert_allclose(np.asarray(aux["all_scores"][0]), np.asarray(ref_scores),
                               rtol=2e-2, atol=2e-2)

    print("KERNEL_OK")
</pallas_src>

<mosaic_0001>
module attributes {stable_mosaic.version = 11 : i64} {
  func.func @_topic_score_kernel(%arg0: memref<1x8xf32, #tpu.memory_space<smem>>, %arg1: memref<8x64xbf16, #tpu.memory_space<vmem>>, %arg2: memref<64x128xbf16, #tpu.memory_space<vmem>>, %arg3: memref<128x128xbf16, #tpu.memory_space<vmem>>, %arg4: memref<1x128xf32, #tpu.memory_space<vmem>>, %arg5: memref<8x128xf32, #tpu.memory_space<vmem>>) attributes {dimension_semantics = [], scalar_prefetch = 0 : i64, scratch_operands = 0 : i64, tpu.core_type = #tpu.core_type<tc>} {
    %c0 = arith.constant 0 : index
    %c0_0 = arith.constant 0 : index
    %0 = vector.load %arg1[%c0, %c0_0] : memref<8x64xbf16, #tpu.memory_space<vmem>>, vector<8x64xbf16>
    %c0_1 = arith.constant 0 : index
    %c0_2 = arith.constant 0 : index
    %1 = vector.load %arg2[%c0_1, %c0_2] : memref<64x128xbf16, #tpu.memory_space<vmem>>, vector<64x128xbf16>
    %cst = arith.constant dense<0.000000e+00> : vector<8x128xf32>
    %2 = tpu.matmul %0, %1, %cst {dimension_numbers = #tpu.dot_dimension_numbers<[1], [0], [0], [1], [0, 0, 1, 1], [], []>} : vector<8x64xbf16>, vector<64x128xbf16>, vector<8x128xf32> -> vector<8x128xf32>
    %3 = arith.truncf %2 : vector<8x128xf32> to vector<8x128xbf16>
    %c0_3 = arith.constant 0 : index
    %c0_4 = arith.constant 0 : index
    %4 = vector.load %arg3[%c0_3, %c0_4] : memref<128x128xbf16, #tpu.memory_space<vmem>>, vector<128x128xbf16>
    %cst_5 = arith.constant dense<0.000000e+00> : vector<8x128xf32>
    %5 = tpu.matmul %3, %4, %cst_5 {dimension_numbers = #tpu.dot_dimension_numbers<[1], [0], [0], [1], [0, 0, 1, 1], [], []>} : vector<8x128xbf16>, vector<128x128xbf16>, vector<8x128xf32> -> vector<8x128xf32>
    %cst_6 = arith.constant 0.0883883461 : f32
    %6 = vector.broadcast %cst_6 : f32 to vector<8x128xf32>
    %7 = arith.mulf %5, %6 : vector<8x128xf32>
    %8 = arith.negf %7 : vector<8x128xf32>
    %9 = math.exp %8 : vector<8x128xf32>
    %cst_7 = arith.constant 1.000000e+00 : f32
    %10 = vector.broadcast %cst_7 : f32 to vector<8x128xf32>
    %11 = arith.addf %10, %9 : vector<8x128xf32>
    %12 = arith.divf %10, %11 : vector<8x128xf32>
    %c0_8 = arith.constant 0 : index
    %c0_9 = arith.constant 0 : index
    %13 = vector.load %arg5[%c0_8, %c0_9] : memref<8x128xf32, #tpu.memory_space<vmem>>, vector<8x128xf32>
    tpu.vector_store %arg5[%c0_8, %c0_9], %12 {strides = array<i32>} : memref<8x128xf32, #tpu.memory_space<vmem>>, vector<8x128xf32>,
    %cst_10 = arith.constant 0.000000e+00 : f32
    %14 = vector.broadcast %cst_10 : f32 to vector<1x128xf32>
    %c0_11 = arith.constant 0 : index
    %c0_12 = arith.constant 0 : index
    %15 = memref.load %arg0[%c0_11, %c0_12] : memref<1x8xf32, #tpu.memory_space<smem>>
    %16 = vector.extract_strided_slice %12 {offsets = [0, 0], sizes = [1, 128], strides = [1, 1]} : vector<8x128xf32> to vector<1x128xf32>
    %17 = vector.broadcast %15 : f32 to vector<1x128xf32>
    %18 = arith.mulf %17, %16 : vector<1x128xf32>
    %c0_13 = arith.constant 0 : index
    %c1 = arith.constant 1 : index
    %19 = memref.load %arg0[%c0_13, %c1] : memref<1x8xf32, #tpu.memory_space<smem>>
    %20 = vector.extract_strided_slice %12 {offsets = [1, 0], sizes = [1, 128], strides = [1, 1]} : vector<8x128xf32> to vector<1x128xf32>
    %21 = vector.broadcast %19 : f32 to vector<1x128xf32>
    %22 = arith.mulf %21, %20 : vector<1x128xf32>
    %23 = arith.addf %18, %22 : vector<1x128xf32>
    %cst_14 = arith.constant 0.000000e+00 : f32
    %24 = vector.broadcast %cst_14 : f32 to vector<1x128xf32>
    %25 = arith.subf %23, %24 : vector<1x128xf32>
    %cst_15 = arith.constant 0.000000e+00 : f32
    %26 = vector.broadcast %cst_15 : f32 to vector<1x128xf32>
    %27 = arith.maximumf %25, %26 : vector<1x128xf32>
    %28 = arith.addf %14, %27 : vector<1x128xf32>
    %c0_16 = arith.constant 0 : index
    %c2 = arith.constant 2 : index
    %29 = memref.load %arg0[%c0_16, %c2] : memref<1x8xf32, #tpu.memory_space<smem>>
    %30 = vector.extract_strided_slice %12 {offsets = [2, 0], sizes = [1, 128], strides = [1, 1]} : vector<8x128xf32> to vector<1x128xf32>
    %31 = vector.broadcast %29 : f32 to vector<1x128xf32>
    %32 = arith.mulf %31, %30 : vector<1x128xf32>
    %c0_17 = arith.constant 0 : index
    %c3 = arith.constant 3 : index
    %33 = memref.load %arg0[%c0_17, %c3] : memref<1x8xf32, #tpu.memory_space<smem>>
    %34 = vector.extract_strided_slice %12 {offsets = [3, 0], sizes = [1, 128], strides = [1, 1]} : vector<8x128xf32> to vector<1x128xf32>
    %35 = vector.broadcast %33 : f32 to vector<1x128xf32>
    %36 = arith.mulf %35, %34 : vector<1x128xf32>
    %37 = arith.addf %32, %36 : vector<1x128xf32>
    %cst_18 = arith.constant 0.000000e+00 : f32
    %38 = vector.broadcast %cst_18 : f32 to vector<1x128xf32>
    %39 = arith.subf %37, %38 : vector<1x128xf32>
    %cst_19 = arith.constant 0.000000e+00 : f32
    %40 = vector.broadcast %cst_19 : f32 to vector<1x128xf32>
    %41 = arith.maximumf %39, %40 : vector<1x128xf32>
    %42 = arith.addf %28, %41 : vector<1x128xf32>
    %c0_20 = arith.constant 0 : index
    %c4 = arith.constant 4 : index
    %43 = memref.load %arg0[%c0_20, %c4] : memref<1x8xf32, #tpu.memory_space<smem>>
    %44 = vector.extract_strided_slice %12 {offsets = [4, 0], sizes = [1, 128], strides = [1, 1]} : vector<8x128xf32> to vector<1x128xf32>
    %45 = vector.broadcast %43 : f32 to vector<1x128xf32>
    %46 = arith.mulf %45, %44 : vector<1x128xf32>
    %c0_21 = arith.constant 0 : index
    %c5 = arith.constant 5 : index
    %47 = memref.load %arg0[%c0_21, %c5] : memref<1x8xf32, #tpu.memory_space<smem>>
    %48 = vector.extract_strided_slice %12 {offsets = [5, 0], sizes = [1, 128], strides = [1, 1]} : vector<8x128xf32> to vector<1x128xf32>
    %49 = vector.broadcast %47 : f32 to vector<1x128xf32>
    %50 = arith.mulf %49, %48 : vector<1x128xf32>
    %51 = arith.addf %46, %50 : vector<1x128xf32>
    %cst_22 = arith.constant 0.000000e+00 : f32
    %52 = vector.broadcast %cst_22 : f32 to vector<1x128xf32>
    %53 = arith.subf %51, %52 : vector<1x128xf32>
    %cst_23 = arith.constant 0.000000e+00 : f32
    %54 = vector.broadcast %cst_23 : f32 to vector<1x128xf32>
    %55 = arith.maximumf %53, %54 : vector<1x128xf32>
    %56 = arith.addf %42, %55 : vector<1x128xf32>
    %c0_24 = arith.constant 0 : index
    %c6 = arith.constant 6 : index
    %57 = memref.load %arg0[%c0_24, %c6] : memref<1x8xf32, #tpu.memory_space<smem>>
    %58 = vector.extract_strided_slice %12 {offsets = [6, 0], sizes = [1, 128], strides = [1, 1]} : vector<8x128xf32> to vector<1x128xf32>
    %59 = vector.broadcast %57 : f32 to vector<1x128xf32>
    %60 = arith.mulf %59, %58 : vector<1x128xf32>
    %c0_25 = arith.constant 0 : index
    %c7 = arith.constant 7 : index
    %61 = memref.load %arg0[%c0_25, %c7] : memref<1x8xf32, #tpu.memory_space<smem>>
    %62 = vector.extract_strided_slice %12 {offsets = [7, 0], sizes = [1, 128], strides = [1, 1]} : vector<8x128xf32> to vector<1x128xf32>
    %63 = vector.broadcast %61 : f32 to vector<1x128xf32>
    %64 = arith.mulf %63, %62 : vector<1x128xf32>
    %65 = arith.addf %60, %64 : vector<1x128xf32>
    %cst_26 = arith.constant 0.000000e+00 : f32
    %66 = vector.broadcast %cst_26 : f32 to vector<1x128xf32>
    %67 = arith.subf %65, %66 : vector<1x128xf32>
    %cst_27 = arith.constant 0.000000e+00 : f32
    %68 = vector.broadcast %cst_27 : f32 to vector<1x128xf32>
    %69 = arith.maximumf %67, %68 : vector<1x128xf32>
    %70 = arith.addf %56, %69 : vector<1x128xf32>
    %cst_28 = arith.constant 1.250000e-01 : f32
    %71 = vector.broadcast %cst_28 : f32 to vector<1x128xf32>
    %72 = arith.mulf %70, %71 : vector<1x128xf32>
    %c0_29 = arith.constant 0 : index
    %c0_30 = arith.constant 0 : index
    %73 = vector.load %arg4[%c0_29, %c0_30] : memref<1x128xf32, #tpu.memory_space<vmem>>, vector<1x128xf32>
    tpu.vector_store %arg4[%c0_29, %c0_30], %72 {strides = array<i32>} : memref<1x128xf32, #tpu.memory_space<vmem>>, vector<1x128xf32>,
    return
  }
}

</mosaic_0001>

<llo_original>
// kernel: tpu_custom_call.1
$region0: #{tpu_custom_call.1}
  #allocation0 [shape = 'u32[]', space=smem, size = 0x4, offset = 0x4, fixed_abs, tag = 'smem constant byte address 0x4 - core index']
  #allocation1 [shape = 'u32[144,128]{1,0:T(1,128)}', space=vmem, size = 0x12000, scoped, tag = 'internal scratch']
  %s0 = inlined_call_operand.hbm [shape: f32[1,8], index: 0, kind: input, shape index: {}]
  %s1 = inlined_call_operand.hbm [shape: bf16[8,64], index: 1, kind: input, shape index: {}]
  %s2 = inlined_call_operand.hbm [shape: bf16[64,128], index: 2, kind: input, shape index: {}]
  %s3 = inlined_call_operand.hbm [shape: bf16[128,128], index: 3, kind: input, shape index: {}]
  %s4 = inlined_call_operand.hbm [shape: f32[1,128], index: 4, kind: output, shape index: {0}]
  %s5 = inlined_call_operand.hbm [shape: f32[8,128], index: 5, kind: output, shape index: {1}]
  %6 = xla_tuple %s4, %s5
  %s7 = sld [smem:[#allocation0]]
  $region50: #{tpu_custom_call.1} parent=0
    _
  %s9 = ssub.s32 1, %s7
  %s10 = scalar_select 0, %s9, %s7
  $region1: #{tpu_custom_call.1} parent=0
    #allocation2 [shape = 'u8[512]{0}', space=smem, size = 0x200, scoped, tag = 'input window, operand 0, single buffered']
    #allocation3 [shape = 's32[1]{0}', space=sflag, size = 0x4, scoped, tag = 'scoped memory for tpu_custom_call.1']
    #allocation4 [shape = 's32[1]{0}', space=sflag, size = 0x4, scoped, tag = 'scoped memory for tpu_custom_call.1']
    #allocation5 [shape = 's32[1]{0}', space=sflag, size = 0x4, scoped, tag = 'scoped memory for tpu_custom_call.1']
    #allocation6 [shape = 'u8[2048]{0}', space=vmem, size = 0x800, scoped, tag = 'input window, operand 1, single buffered']
    #allocation7 [shape = 'u8[16384]{0}', space=vmem, size = 0x4000, scoped, tag = 'input window, operand 2, single buffered']
    #allocation8 [shape = 's32[1]{0}', space=sflag, size = 0x4, scoped, tag = 'scoped memory for tpu_custom_call.1']
    #allocation9 [shape = 'u8[32768]{0}', space=vmem, size = 0x8000, scoped, tag = 'input window, operand 3, single buffered']
    #allocation10 [shape = 'u8[512]{0}', space=vmem, size = 0x400, scoped, tag = 'output window, operand 0, single buffered']
    #allocation11 [shape = 'u8[4096]{0}', space=vmem, size = 0x1000, scoped, tag = 'output window, operand 1, single buffered']
    #allocation12 [shape = 's32[1]{0}', space=sflag, size = 0x4, scoped, tag = 'scoped memory for tpu_custom_call.1']
    %11 = vsyncpa [#allocation5], 0
    %12 = vsyncpa [#allocation3], 0
    %13 = vsyncpa [#allocation8], 0
    %14 = vsyncpa [#allocation4], 0
    %15 = vsyncpa [#allocation12], 0
    // Predicated region
    $region2: #{tpu_custom_call.1} parent=1 // pred_check
      _
    $region3: #{tpu_custom_call.1} parent=1 // pred_check_branch
      %17 = sbr.rel (0) target = $region5
    $region4: #{tpu_custom_call.1} parent=1 // pred_region
      %s19 = ssub.s32 16, 16
      %20 = vsyncadd [#allocation5], %s19
      %23 = dma.hbm_to_smem %s0, 16, [#allocation2], [#allocation5]
    $region5: #{tpu_custom_call.1} parent=1 // pred_fallthru
      _
    // Predicated region
    $region6: #{tpu_custom_call.1} parent=1 // pred_check
      _
    $region7: #{tpu_custom_call.1} parent=1 // pred_check_branch
      %25 = sbr.rel (0) target = $region9
    $region8: #{tpu_custom_call.1} parent=1 // pred_region
      %s27 = ssub.s32 64, 64
      %28 = vsyncadd [#allocation3], %s27
      %s30 = sshll.u32 [#allocation6], 4
      %s31 = int_to_ptr.vmem [resolvable:$true] %s30
      %33 = dma.hbm_to_vmem [thread:$0]  %s1, 64, %s31, [#allocation3]
    $region9: #{tpu_custom_call.1} parent=1 // pred_fallthru
      _
    // Predicated region
    $region10: #{tpu_custom_call.1} parent=1 // pred_check
      _
    $region11: #{tpu_custom_call.1} parent=1 // pred_check_branch
      %35 = sbr.rel (0) target = $region13
    $region12: #{tpu_custom_call.1} parent=1 // pred_region
      %s37 = ssub.s32 512, 512
      %38 = vsyncadd [#allocation8], %s37
      %s39 = sshll.u32 [#allocation7], 4
      %s40 = int_to_ptr.vmem [resolvable:$true] %s39
      %45 = dma.hbm_to_vmem [thread:$0]  %s2, 512, %s40, [#allocation8], 64, 64, 4
    $region13: #{tpu_custom_call.1} parent=1 // pred_fallthru
      _
    // Predicated region
    $region14: #{tpu_custom_call.1} parent=1 // pred_check
      _
    $region15: #{tpu_custom_call.1} parent=1 // pred_check_branch
      %47 = sbr.rel (0) target = $region17
    $region16: #{tpu_custom_call.1} parent=1 // pred_region
      %s49 = ssub.s32 1024, 1024
      %50 = vsyncadd [#allocation8], %s49
      %s51 = sshll.u32 [#allocation9], 4
      %s52 = int_to_ptr.vmem [resolvable:$true] %s51
      %57 = dma.hbm_to_vmem [thread:$0]  %s3, 1024, %s52, [#allocation8], 64, 64, 4
    $region17: #{tpu_custom_call.1} parent=1 // pred_fallthru
      _
    // Predicated region
    $region18: #{tpu_custom_call.1} parent=1 // pred_check
      _
    $region19: #{tpu_custom_call.1} parent=1 // pred_check_branch
      %59 = sbr.rel (0) target = $region21
    $region20: #{tpu_custom_call.1} parent=1 // pred_region
      %60 = dma.done [#allocation5], 16
    $region21: #{tpu_custom_call.1} parent=1 // pred_fallthru
      _
    // Predicated region
    $region22: #{tpu_custom_call.1} parent=1 // pred_check
      _
    $region23: #{tpu_custom_call.1} parent=1 // pred_check_branch
      %62 = sbr.rel (0) target = $region25
    $region24: #{tpu_custom_call.1} parent=1 // pred_region
      %63 = dma.done [#allocation3], 64
    $region25: #{tpu_custom_call.1} parent=1 // pred_fallthru
      _
    // Predicated region
    $region26: #{tpu_custom_call.1} parent=1 // pred_check
      _
    $region27: #{tpu_custom_call.1} parent=1 // pred_check_branch
      %65 = sbr.rel (0) target = $region29
    $region28: #{tpu_custom_call.1} parent=1 // pred_region
      %66 = dma.done [#allocation8], 512
    $region29: #{tpu_custom_call.1} parent=1 // pred_fallthru
      _
    // Predicated region
    $region30: #{tpu_custom_call.1} parent=1 // pred_check
      _
    $region31: #{tpu_custom_call.1} parent=1 // pred_check_branch
      %68 = sbr.rel (0) target = $region33
    $region32: #{tpu_custom_call.1} parent=1 // pred_region
      %69 = dma.done [#allocation8], 1024
    $region33: #{tpu_custom_call.1} parent=1 // pred_fallthru
      _
    %70 = sfence
    %v72 = vld [vmem:[#allocation6] sm:$0xf]
    %v73 = vld [vmem:[#allocation7] sm:$0xf]
    %v74 = vld [vmem:[#allocation7 + $0x4] sm:$0xf]
    %v75 = vld [vmem:[#allocation7 + $0x8] sm:$0xf]
    %v76 = vld [vmem:[#allocation7 + $0xc] sm:$0xf]
    %v77 = vld [vmem:[#allocation7 + $0x10] sm:$0xf]
    %v78 = vld [vmem:[#allocation7 + $0x14] sm:$0xf]
    %v79 = vld [vmem:[#allocation7 + $0x18] sm:$0xf]
    %v80 = vld [vmem:[#allocation7 + $0x1c] sm:$0xf]
    %v89 = vunpack.c.l.b16 %v73
    %v90 = vunpack.c.l.b16 %v74
    %v91 = vunpack.c.l.b16 %v75
    %v92 = vunpack.c.l.b16 %v76
    %v93 = vunpack.c.l.b16 %v77
    %v94 = vunpack.c.l.b16 %v78
    %v95 = vunpack.c.l.b16 %v79
    %v96 = vunpack.c.l.b16 %v80
    %v97 = vpack.c.b16 %v90, %v89
    %v98 = vpack.c.b16 %v92, %v91
    %v99 = vpack.c.b16 %v94, %v93
    %v100 = vpack.c.b16 %v96, %v95
    %vm105 = vcmask 523264
    %v107 = vsel %vm105, %v72, 0
    %109 = vmatprep.subr.bf16.mxu0 0
    %110 = vmatpush1.bf16.msra.mxu0 %v97
    %111 = vmatprep.subr.bf16.mxu0 0
    %112 = vmatpush1.bf16.msra.mxu0 %v98
    %113 = vmatprep.subr.bf16.mxu0 0
    %114 = vmatpush1.bf16.msra.mxu0 %v99
    %115 = vmatprep.subr.bf16.mxu0 0
    %116 = vmatpush1.bf16.msra.mxu0 %v100
    %117 = vmatprep.subr.bf16.mxu0 0
    %118 = vmatpush1.bf16.msra.mxu0 0
    %119 = vmatprep.subr.bf16.mxu0 0
    %120 = vmatpush1.bf16.msra.mxu0 0
    %121 = vmatprep.subr.bf16.mxu0 0
    %122 = vmatpush1.bf16.msra.mxu0 0
    %123 = vmatprep.subr.bf16.mxu0 0
    %124 = vmatpush1.bf16.msra.mxu0 0
    %125 = vmatprep.subr.bf16.mxu0 0
    %126 = vmatpush1.bf16.msra.mxu0 0
    %127 = vmatprep.subr.bf16.mxu0 0
    %128 = vmatpush1.bf16.msra.mxu0 0
    %129 = vmatprep.subr.bf16.mxu0 0
    %130 = vmatpush1.bf16.msra.mxu0 0
    %131 = vmatprep.subr.bf16.mxu0 0
    %132 = vmatpush1.bf16.msra.mxu0 0
    %133 = vmatprep.subr.bf16.mxu0 0
    %134 = vmatpush1.bf16.msra.mxu0 0
    %135 = vmatprep.subr.bf16.mxu0 0
    %136 = vmatpush1.bf16.msra.mxu0 0
    %137 = vmatprep.subr.bf16.mxu0 0
    %138 = vmatpush1.bf16.msra.mxu0 0
    %139 = vmatprep.subr.bf16.mxu0 0
    %140 = vmatpush1.bf16.msra.mxu0 0
    %141 = vmatprep.mubr.bf16.mxu0 0
    %142 = vmatmul.mubr.bf16.gmra.mrb[0].mxu0 %v107
    %v143 = vpop.f32.mrb[0].mxu0
    %v144 = vadd.f32 0.0, %v143
    %v145 = vpop.f32.mrb[0].mxu0
    %v146 = vpop.f32.mrb[0].mxu0
    %v147 = vpop.f32.mrb[0].mxu0
    %148 = vdwg.mxu0
    %v149 = vpack.c.bf16 %v144, %v144
    %v150 = vld [vmem:[#allocation9] sm:$0xf]
    %v151 = vld [vmem:[#allocation9 + $0x4] sm:$0xf]
    %v152 = vld [vmem:[#allocation9 + $0x8] sm:$0xf]
    %v153 = vld [vmem:[#allocation9 + $0xc] sm:$0xf]
    %v154 = vld [vmem:[#allocation9 + $0x10] sm:$0xf]
    %v155 = vld [vmem:[#allocation9 + $0x14] sm:$0xf]
    %v156 = vld [vmem:[#allocation9 + $0x18] sm:$0xf]
    %v157 = vld [vmem:[#allocation9 + $0x1c] sm:$0xf]
    %v158 = vld [vmem:[#allocation9 + $0x20] sm:$0xf]
    %v159 = vld [vmem:[#allocation9 + $0x24] sm:$0xf]
    %v160 = vld [vmem:[#allocation9 + $0x28] sm:$0xf]
    %v161 = vld [vmem:[#allocation9 + $0x2c] sm:$0xf]
    %v162 = vld [vmem:[#allocation9 + $0x30] sm:$0xf]
    %v163 = vld [vmem:[#allocation9 + $0x34] sm:$0xf]
    %v164 = vld [vmem:[#allocation9 + $0x38] sm:$0xf]
    %v165 = vld [vmem:[#allocation9 + $0x3c] sm:$0xf]
    %v182 = vunpack.c.l.b16 %v150
    %v183 = vunpack.c.l.b16 %v151
    %v184 = vunpack.c.l.b16 %v152
    %v185 = vunpack.c.l.b16 %v153
    %v186 = vunpack.c.l.b16 %v154
    %v187 = vunpack.c.l.b16 %v155
    %v188 = vunpack.c.l.b16 %v156
    %v189 = vunpack.c.l.b16 %v157
    %v190 = vunpack.c.l.b16 %v158
    %v191 = vunpack.c.l.b16 %v159
    %v192 = vunpack.c.l.b16 %v160
    %v193 = vunpack.c.l.b16 %v161
    %v194 = vunpack.c.l.b16 %v162
    %v195 = vunpack.c.l.b16 %v163
    %v196 = vunpack.c.l.b16 %v164
    %v197 = vunpack.c.l.b16 %v165
    %v198 = vpack.c.b16 %v183, %v182
    %v199 = vpack.c.b16 %v185, %v184
    %v200 = vpack.c.b16 %v187, %v186
    %v201 = vpack.c.b16 %v189, %v188
    %v202 = vpack.c.b16 %v191, %v190
    %v203 = vpack.c.b16 %v193, %v192
    %v204 = vpack.c.b16 %v195, %v194
    %v205 = vpack.c.b16 %v197, %v196
    %214 = vmatprep.subr.bf16.mxu0 0
    %215 = vmatpush1.bf16.msra.mxu0 %v198
    %216 = vmatprep.subr.bf16.mxu0 0
    %217 = vmatpush1.bf16.msra.mxu0 %v199
    %218 = vmatprep.subr.bf16.mxu0 0
    %219 = vmatpush1.bf16.msra.mxu0 %v200
    %220 = vmatprep.subr.bf16.mxu0 0
    %221 = vmatpush1.bf16.msra.mxu0 %v201
    %222 = vmatprep.subr.bf16.mxu0 0
    %223 = vmatpush1.bf16.msra.mxu0 %v202
    %224 = vmatprep.subr.bf16.mxu0 0
    %225 = vmatpush1.bf16.msra.mxu0 %v203
    %226 = vmatprep.subr.bf16.mxu0 0
    %227 = vmatpush1.bf16.msra.mxu0 %v204
    %228 = vmatprep.subr.bf16.mxu0 0
    %229 = vmatpush1.bf16.msra.mxu0 %v205
    %230 = vmatprep.subr.bf16.mxu0 0
    %231 = vmatpush1.bf16.msra.mxu0 0
    %232 = vmatprep.subr.bf16.mxu0 0
    %233 = vmatpush1.bf16.msra.mxu0 0
    %234 = vmatprep.subr.bf16.mxu0 0
    %235 = vmatpush1.bf16.msra.mxu0 0
    %236 = vmatprep.subr.bf16.mxu0 0
    %237 = vmatpush1.bf16.msra.mxu0 0
    %238 = vmatprep.subr.bf16.mxu0 0
    %239 = vmatpush1.bf16.msra.mxu0 0
    %240 = vmatprep.subr.bf16.mxu0 0
    %241 = vmatpush1.bf16.msra.mxu0 0
    %242 = vmatprep.subr.bf16.mxu0 0
    %243 = vmatpush1.bf16.msra.mxu0 0
    %244 = vmatprep.subr.bf16.mxu0 0
    %245 = vmatpush1.bf16.msra.mxu0 0
    %246 = vmatprep.mubr.bf16.mxu0 0
    %247 = vmatmul.mubr.bf16.gmra.mrb[0].mxu0 %v149
    %v248 = vpop.f32.mrb[0].mxu0
    %v249 = vadd.f32 0.0, %v248
    %v250 = vpop.f32.mrb[0].mxu0
    %v251 = vpop.f32.mrb[0].mxu0
    %v252 = vpop.f32.mrb[0].mxu0
    %253 = vdwg.mxu0
    %v254 = vmul.f32 %v249, 0.088388346
    %v255 = vxor.u32 %v254, 2147483648
    %v256 = vmul.f32 %v255, 1.442695
    %v257 = vpow.pop %v256
    %v258 = vadd.f32 %v257, 1.0
    %v259 = vrcp.pop %v258
    %v260 = vmul.f32 1.0, %v259
    %261 = vst [vmem:[#allocation11] sm:$0xff] %v260
    %s262 = sld [smem:[#allocation2]]
    %v263 = vstv %s262
    %v264 = vmul.f32 %v263, %v260
    %s265 = sld [smem:[#allocation2 + $0x1]]
    %v266 = vstv %s265
    %v267 = vmul.f32 %v266, %v260
    %v269 = vrot.slane %v267, 1
    %v271 = vadd.f32 %v264, %v269
    %v272 = vmax.f32 %v271, 0.0
    %v273 = vadd.f32 %v272, 0.0
    %s274 = sld [smem:[#allocation2 + $0x2]]
    %v275 = vstv %s274
    %v276 = vmul.f32 %v275, %v260
    %s277 = sld [smem:[#allocation2 + $0x3]]
    %v278 = vstv %s277
    %v279 = vmul.f32 %v278, %v260
    %v281 = vrot.slane %v279, 1
    %v283 = vadd.f32 %v276, %v281
    %v284 = vmax.f32 %v283, 0.0
    %v286 = vrot.slane %v284, 2
    %v288 = vadd.f32 %v273, %v286
    %s289 = sld [smem:[#allocation2 + $0x4]]
    %v290 = vstv %s289
    %v291 = vmul.f32 %v290, %v260
    %s292 = sld [smem:[#allocation2 + $0x5]]
    %v293 = vstv %s292
    %v294 = vmul.f32 %v293, %v260
    %v296 = vrot.slane %v294, 1
    %v298 = vadd.f32 %v291, %v296
    %v299 = vmax.f32 %v298, 0.0
    %v301 = vrot.slane %v299, 4
    %v303 = vadd.f32 %v288, %v301
    %s304 = sld [smem:[#allocation2 + $0x6]]
    %v305 = vstv %s304
    %v306 = vmul.f32 %v305, %v260
    %s307 = sld [smem:[#allocation2 + $0x7]]
    %v308 = vstv %s307
    %v309 = vmul.f32 %v308, %v260
    %v311 = vrot.slane %v309, 1
    %v313 = vadd.f32 %v306, %v311
    %v314 = vmax.f32 %v313, 0.0
    %v316 = vrot.slane %v314, 6
    %v318 = vadd.f32 %v303, %v316
    %v319 = vmul.f32 %v318, 0.125
    %320 = vst [vmem:[#allocation10] sm:$0x1] %v319
    // Predicated region
    $region34: #{tpu_custom_call.1} parent=1 // pred_check
      _
    $region35: #{tpu_custom_call.1} parent=1 // pred_check_branch
      %322 = sbr.rel (0) target = $region37
    $region36: #{tpu_custom_call.1} parent=1 // pred_region
      %s324 = ssub.s32 16, 16
      %325 = vsyncadd [#allocation4], %s324
      %s327 = sshll.u32 [#allocation10], 4
      %s328 = int_to_ptr.vmem [resolvable:$true] %s327
      %330 = dma.vmem_to_hbm [thread:$0]  %s328, 16, %s4, [#allocation4]
    $region37: #{tpu_custom_call.1} parent=1 // pred_fallthru
      _
    // Predicated region
    $region38: #{tpu_custom_call.1} parent=1 // pred_check
      _
    $region39: #{tpu_custom_call.1} parent=1 // pred_check_branch
      %332 = sbr.rel (0) target = $region41
    $region40: #{tpu_custom_call.1} parent=1 // pred_region
      %s334 = ssub.s32 128, 128
      %335 = vsyncadd [#allocation12], %s334
      %s337 = sshll.u32 [#allocation11], 4
      %s338 = int_to_ptr.vmem [resolvable:$true] %s337
      %340 = dma.vmem_to_hbm [thread:$0]  %s338, 128, %s5, [#allocation12]
    $region41: #{tpu_custom_call.1} parent=1 // pred_fallthru
      _
    // Predicated region
    $region42: #{tpu_custom_call.1} parent=1 // pred_check
      _
    $region43: #{tpu_custom_call.1} parent=1 // pred_check_branch
      %342 = sbr.rel (0) target = $region45
    $region44: #{tpu_custom_call.1} parent=1 // pred_region
      %343 = dma.done [#allocation4], 16
    $region45: #{tpu_custom_call.1} parent=1 // pred_fallthru
      _
    // Predicated region
    $region46: #{tpu_custom_call.1} parent=1 // pred_check
      _
    $region47: #{tpu_custom_call.1} parent=1 // pred_check_branch
      %345 = sbr.rel (0) target = $region49
    $region48: #{tpu_custom_call.1} parent=1 // pred_region
      %346 = dma.done [#allocation12], 128
    $region49: #{tpu_custom_call.1} parent=1 // pred_fallthru
      _
    %347 = vsyncpa [#allocation3], 1
    %348 = vsyncpa [#allocation8], 1
    %349 = vsyncpa [#allocation4], 1
    %350 = vsyncpa [#allocation12], 1
    %351 = vsyncpa [#allocation5], 1

</llo_original>
